<compile_context>
chip_gen: v6e
topology: v6e:2x2x1
jax: 0.10.0
libtpu: 0.0.40
codegen_flags: <defaults>
</compile_context>

<pallas_src>
import functools

import numpy as np
import jax
import jax.numpy as jnp
from jax.experimental import pallas as pl
from jax.experimental.pallas import tpu as pltpu

# ---- static config ----
N, H, W = 2, 16, 16
CIN, COUT = 4, 4
K, T = 3, 6
CT = CIN * T            # 24 expanded channels
PAD = K // 2
HW = H * W              # 256 (multiple of 128)
EPS = 1e-5

# flattened-lane offset of each depthwise tap (dy, dx), row-major
_TAP_OFF = tuple((dy - PAD) * W + (dx - PAD) for dy in range(K) for dx in range(K))
_CENTER = K * K // 2                                            # tap with offset 0
_NONCENTER = tuple((t, off) for t, off in enumerate(_TAP_OFF) if off != 0)
assert len(_NONCENTER) == K * K - 1


def _build_masks_np():
    """Zero-padding boundary masks for the 8 non-center taps (compile-time,
    numpy).  Row order == _NONCENTER order (dy-major, dx-minor, center skipped).
    For per-image row-major lanes with PAD=1, these masks zero exactly the lanes
    that a circular lane roll wraps across the image boundary."""
    yy, xx = np.meshgrid(np.arange(H), np.arange(W), indexing="ij")
    rows = []
    for dy in range(K):
        for dx in range(K):
            if (dy - PAD) * W + (dx - PAD) == 0:
                continue
            ok = ((yy + dy - PAD >= 0) & (yy + dy - PAD < H) &
                  (xx + dx - PAD >= 0) & (xx + dx - PAD < W))
            rows.append(ok.reshape(HW).astype(np.float32))
    return np.stack(rows)                                       # (8, HW)


_MASKS_NP = _build_masks_np()


@functools.lru_cache(maxsize=1)
def _tap_dtype():
    """bf16 tap loop only where the VPU has bf16 ALUs (v6e / v7x); f32 otherwise
    (v5e would emulate).  Cached; safe f32 fallback if detection fails."""
    try:
        kind = jax.devices()[0].device_kind.lower().replace(" ", "")
    except Exception:
        return jnp.float32
    if any(tag in kind for tag in ("v6", "6e", "v7", "7x")):
        return jnp.bfloat16
    return jnp.float32


# ---------------- kernel ----------------

def supvalcell_kernel(x_ref, w1_ref, b1_ref, w2_ref, b2_ref, m_ref,
                      w3_ref, b3_ref, o_ref, *, tap_dtype):
    x = x_ref[...]                                              # (CIN, HW) f32

    # conv1: 1x1 expand on the MXU; BN scale pre-folded into w1, bias + ReLU.
    h1 = jnp.dot(w1_ref[...], x, preferred_element_type=jnp.float32)
    h1 = jnp.maximum(h1 + b1_ref[...], 0.0)                     # (CT, HW) f32
    h1 = h1.astype(tap_dtype)                                   # bf16 on v6e/v7x

    # conv2: 3x3 depthwise, stride 1, zero pad 1.  Each non-center tap is a
    # circular lane roll of h1 (XLU slot) masked by the precomputed boundary
    # mask, times the per-channel tap weight ((CT, 1) column -> no reshape).
    acc = h1 * w2_ref[_CENTER]                                  # center tap
    for r, (t, off) in enumerate(_NONCENTER):
        shifted = pltpu.roll(h1, shift=(-off) % HW, axis=1)
        acc = acc + (shifted * m_ref[pl.ds(r, 1), :]) * w2_ref[t]
    h2 = jnp.maximum(acc + b2_ref[...], 0.0)                    # (CT, HW)

    # conv3: 1x1 project on the MXU in f32 (max accuracy; MXU has large slack);
    # BN folded; bias + residual add in f32.
    h3 = jnp.dot(w3_ref[...], h2.astype(jnp.float32),
                 preferred_element_type=jnp.float32)
    o_ref[...] = h3 + b3_ref[...] + x


# ---------------- single-jit forward ----------------

def _forward(x_nchw, w1k, b1k, w2k, b2k, mask, w3k, b3k, *, tap_dtype):
    x_slab = x_nchw.reshape(N, CIN, HW)                         # free, contiguous
    full = lambda shape: pl.BlockSpec(shape, lambda i: (0,) * len(shape))
    tap_bytes = jnp.dtype(tap_dtype).itemsize

    out = pl.pallas_call(
        functools.partial(supvalcell_kernel, tap_dtype=tap_dtype),
        out_shape=jax.ShapeDtypeStruct((N, COUT, HW), jnp.float32),
        grid_spec=pltpu.PrefetchScalarGridSpec(
            num_scalar_prefetch=0,
            grid=(N,),                                          # one image / step
            in_specs=[
                pl.BlockSpec((None, CIN, HW), lambda i: (i, 0, 0)),
                full((CT, CIN)), full((CT, 1)),
                full((K * K, CT, 1)), full((CT, 1)),
                full((K * K - 1, HW)),
                full((COUT, CT)), full((COUT, 1)),
            ],
            out_specs=pl.BlockSpec((None, COUT, HW), lambda i: (i, 0, 0)),
        ),
        compiler_params=pltpu.CompilerParams(
            dimension_semantics=("parallel",)),
        cost_estimate=pl.CostEstimate(
            flops=2 * N * HW * CT * (CIN + K * K + COUT),
            transcendentals=0,
            bytes_accessed=4 * N * HW * (CIN + COUT)
            + 4 * (CT * CIN + CT + COUT * CT + COUT)
            + tap_bytes * (K * K * CT + CT + (K * K - 1) * HW)),
    )(x_slab, w1k, b1k, w2k, b2k, mask, w3k, b3k)

    return out.reshape(N, COUT, H, W)                           # free, contiguous


def _fold_bn(gamma, beta, mean, var):
    scale = gamma / jnp.sqrt(var + EPS)
    return scale, beta - mean * scale


def make_supvalcell(params):
    """Fold BN into the conv weights ONCE, cache the folded operands on device,
    and return a jitted x -> y forward (single dispatch per call)."""
    w1, bn1, w2, bn2, w3, bn3 = params
    s1, b1 = _fold_bn(*bn1)
    s2, b2 = _fold_bn(*bn2)
    s3, b3 = _fold_bn(*bn3)
    td = _tap_dtype()

    w1k = jnp.asarray(w1 * s1[:, None], jnp.float32)                       # (CT, CIN)
    b1k = jnp.asarray(b1[:, None], jnp.float32)                            # (CT, 1)
    w2k = jnp.asarray((w2 * s2[:, None, None]).reshape(CT, K * K).T[:, :, None], td)  # (9, CT, 1)
    b2k = jnp.asarray(b2[:, None], td)                                     # (CT, 1)
    w3k = jnp.asarray(w3 * s3[:, None], jnp.float32)                       # (COUT, CT)
    b3k = jnp.asarray(b3[:, None], jnp.float32)                            # (COUT, 1)
    mask = jnp.asarray(_MASKS_NP, td)                                      # (8, HW)

    operands = jax.device_put((w1k, b1k, w2k, b2k, mask, w3k, b3k))
    fwd_impl = jax.jit(functools.partial(_forward, tap_dtype=td))

    def forward(x_nchw):
        """x_nchw: (N, CIN, H, W) float32 — same layout as the PyTorch module."""
        return fwd_impl(x_nchw, *operands)

    return forward


# ---------------- parameters & pure-JAX reference ----------------

def make_bn(key, c):
    kg, kb, km, kv = jax.random.split(key, 4)
    gamma = 1.0 + 0.1 * jax.random.normal(kg, (c,), jnp.float32)
    beta = 0.1 * jax.random.normal(kb, (c,), jnp.float32)
    mean = 0.1 * jax.random.normal(km, (c,), jnp.float32)
    var = 0.5 + jax.random.uniform(kv, (c,), jnp.float32)
    return gamma, beta, mean, var


def make_params(key):
    ks = jax.random.split(key, 6)
    w1 = 0.2 * jax.random.normal(ks[0], (CT, CIN), jnp.float32)   # conv1 (CT,CIN,1,1)
    w2 = 0.2 * jax.random.normal(ks[1], (CT, K, K), jnp.float32)  # conv2 (CT,1,K,K) depthwise
    w3 = 0.2 * jax.random.normal(ks[2], (COUT, CT), jnp.float32)  # conv3 (COUT,CT,1,1)
    return (w1, make_bn(ks[3], CT), w2, make_bn(ks[4], CT), w3, make_bn(ks[5], COUT))


def ref_forward(x, params):
    """Pure-JAX (lax conv, NCHW) reference of LinearBottleneck(k=3,t=6) + residual."""
    w1, bn1, w2, bn2, w3, bn3 = params
    dn = ("NCHW", "OIHW", "NCHW")
    hi = jax.lax.Precision.HIGHEST

    def bn(h, p):
        g, b, m, v = p
        s = g / jnp.sqrt(v + EPS)
        return h * s[None, :, None, None] + (b - m * s)[None, :, None, None]

    h = jax.lax.conv_general_dilated(x, w1[:, :, None, None], (1, 1), "VALID",
                                     dimension_numbers=dn, precision=hi)
    h = jnp.maximum(bn(h, bn1), 0.0)
    h = jax.lax.conv_general_dilated(h, w2[:, None, :, :], (1, 1), "SAME",
                                     dimension_numbers=dn,
                                     feature_group_count=CT, precision=hi)
    h = jnp.maximum(bn(h, bn2), 0.0)
    h = jax.lax.conv_general_dilated(h, w3[:, :, None, None], (1, 1), "VALID",
                                     dimension_numbers=dn, precision=hi)
    h = bn(h, bn3)
    return h + x


if __name__ == "__main__":
    key = jax.random.PRNGKey(0)
    kx, kp = jax.random.split(key)
    x = jax.random.normal(kx, (N, CIN, H, W), jnp.float32)   # NCHW, like PyTorch
    params = make_params(kp)

    fwd = make_supvalcell(params)
    out = jax.block_until_ready(fwd(x))
    ref = jax.block_until_ready(ref_forward(x, params))

    assert out.shape == (N, COUT, H, W)
    err = float(jnp.max(jnp.abs(out - ref)))
    assert jnp.allclose(out, ref, rtol=1e-2, atol=1e-2), err
    print("KERNEL_OK")
</pallas_src>

<mosaic_0001>
module attributes {stable_mosaic.version = 11 : i64} {
  func.func @supvalcell_kernel(%arg0: i32, %arg1: memref<1x4x256xf32, #tpu.memory_space<vmem>>, %arg2: memref<24x4xf32, #tpu.memory_space<vmem>>, %arg3: memref<24x1xf32, #tpu.memory_space<vmem>>, %arg4: memref<9x24x1xf32, #tpu.memory_space<vmem>>, %arg5: memref<24x1xf32, #tpu.memory_space<vmem>>, %arg6: memref<8x256xf32, #tpu.memory_space<vmem>>, %arg7: memref<4x24xf32, #tpu.memory_space<vmem>>, %arg8: memref<4x1xf32, #tpu.memory_space<vmem>>, %arg9: memref<1x4x256xf32, #tpu.memory_space<vmem>>) attributes {dimension_semantics = [#tpu.dimension_semantics<parallel>], iteration_bounds = array<i64: 2>, scalar_prefetch = 0 : i64, scratch_operands = 0 : i64, tpu.core_type = #tpu.core_type<tc>, window_params = [{transform_indices = @transform_0, window_bounds = array<i64: 1, 4, 256>}, {pipeline_mode = #tpu.pipeline_mode<synchronous>, transform_indices = @transform_1, window_bounds = array<i64: 24, 4>}, {pipeline_mode = #tpu.pipeline_mode<synchronous>, transform_indices = @transform_2, window_bounds = array<i64: 24, 1>}, {pipeline_mode = #tpu.pipeline_mode<synchronous>, transform_indices = @transform_3, window_bounds = array<i64: 9, 24, 1>}, {pipeline_mode = #tpu.pipeline_mode<synchronous>, transform_indices = @transform_4, window_bounds = array<i64: 24, 1>}, {pipeline_mode = #tpu.pipeline_mode<synchronous>, transform_indices = @transform_5, window_bounds = array<i64: 8, 256>}, {pipeline_mode = #tpu.pipeline_mode<synchronous>, transform_indices = @transform_6, window_bounds = array<i64: 4, 24>}, {pipeline_mode = #tpu.pipeline_mode<synchronous>, transform_indices = @transform_7, window_bounds = array<i64: 4, 1>}, {transform_indices = @transform_8, window_bounds = array<i64: 1, 4, 256>}]} {
    %c0 = arith.constant 0 : index
    %c0_0 = arith.constant 0 : index
    %c0_1 = arith.constant 0 : index
    %0 = vector.load %arg1[%c0, %c0_0, %c0_1] : memref<1x4x256xf32, #tpu.memory_space<vmem>>, vector<1x4x256xf32>
    %1 = vector.shape_cast %0 : vector<1x4x256xf32> to vector<4x256xf32>
    %c0_2 = arith.constant 0 : index
    %c0_3 = arith.constant 0 : index
    %2 = vector.load %arg2[%c0_2, %c0_3] : memref<24x4xf32, #tpu.memory_space<vmem>>, vector<24x4xf32>
    %cst = arith.constant dense<0.000000e+00> : vector<24x256xf32>
    %3 = tpu.matmul %2, %1, %cst {dimension_numbers = #tpu.dot_dimension_numbers<[1], [0], [0], [1], [0, 0, 1, 1], [], []>} : vector<24x4xf32>, vector<4x256xf32>, vector<24x256xf32> -> vector<24x256xf32>
    %c0_4 = arith.constant 0 : index
    %c0_5 = arith.constant 0 : index
    %4 = vector.load %arg3[%c0_4, %c0_5] : memref<24x1xf32, #tpu.memory_space<vmem>>, vector<24x1xf32>
    %5 = vector.broadcast %4 : vector<24x1xf32> to vector<24x256xf32>
    %6 = arith.addf %3, %5 : vector<24x256xf32>
    %cst_6 = arith.constant 0.000000e+00 : f32
    %7 = vector.broadcast %cst_6 : f32 to vector<24x256xf32>
    %8 = arith.maximumf %6, %7 : vector<24x256xf32>
    %c4 = arith.constant 4 : index
    %c0_7 = arith.constant 0 : index
    %c0_8 = arith.constant 0 : index
    %9 = vector.load %arg4[%c4, %c0_7, %c0_8] : memref<9x24x1xf32, #tpu.memory_space<vmem>>, vector<1x24x1xf32>
    %10 = vector.shape_cast %9 : vector<1x24x1xf32> to vector<24x1xf32>
    %11 = vector.broadcast %10 : vector<24x1xf32> to vector<24x256xf32>
    %12 = arith.mulf %8, %11 : vector<24x256xf32>
    %c17_i32 = arith.constant 17 : i32
    %13 = tpu.dynamic_rotate %8 by %c17_i32 dim 1 : vector<24x256xf32>, i32 -> vector<24x256xf32>
    %c0_9 = arith.constant 0 : index
    %c0_10 = arith.constant 0 : index
    %14 = vector.load %arg6[%c0_9, %c0_10] : memref<8x256xf32, #tpu.memory_space<vmem>>, vector<1x256xf32>
    %15 = vector.broadcast %14 : vector<1x256xf32> to vector<24x256xf32>
    %16 = arith.mulf %13, %15 : vector<24x256xf32>
    %c0_11 = arith.constant 0 : index
    %c0_12 = arith.constant 0 : index
    %c0_13 = arith.constant 0 : index
    %17 = vector.load %arg4[%c0_11, %c0_12, %c0_13] : memref<9x24x1xf32, #tpu.memory_space<vmem>>, vector<1x24x1xf32>
    %18 = vector.shape_cast %17 : vector<1x24x1xf32> to vector<24x1xf32>
    %19 = vector.broadcast %18 : vector<24x1xf32> to vector<24x256xf32>
    %20 = arith.mulf %16, %19 : vector<24x256xf32>
    %21 = arith.addf %12, %20 : vector<24x256xf32>
    %c16_i32 = arith.constant 16 : i32
    %22 = tpu.dynamic_rotate %8 by %c16_i32 dim 1 : vector<24x256xf32>, i32 -> vector<24x256xf32>
    %c1 = arith.constant 1 : index
    %c0_14 = arith.constant 0 : index
    %23 = vector.load %arg6[%c1, %c0_14] : memref<8x256xf32, #tpu.memory_space<vmem>>, vector<1x256xf32>
    %24 = vector.broadcast %23 : vector<1x256xf32> to vector<24x256xf32>
    %25 = arith.mulf %22, %24 : vector<24x256xf32>
    %c1_15 = arith.constant 1 : index
    %c0_16 = arith.constant 0 : index
    %c0_17 = arith.constant 0 : index
    %26 = vector.load %arg4[%c1_15, %c0_16, %c0_17] : memref<9x24x1xf32, #tpu.memory_space<vmem>>, vector<1x24x1xf32>
    %27 = vector.shape_cast %26 : vector<1x24x1xf32> to vector<24x1xf32>
    %28 = vector.broadcast %27 : vector<24x1xf32> to vector<24x256xf32>
    %29 = arith.mulf %25, %28 : vector<24x256xf32>
    %30 = arith.addf %21, %29 : vector<24x256xf32>
    %c15_i32 = arith.constant 15 : i32
    %31 = tpu.dynamic_rotate %8 by %c15_i32 dim 1 : vector<24x256xf32>, i32 -> vector<24x256xf32>
    %c2 = arith.constant 2 : index
    %c0_18 = arith.constant 0 : index
    %32 = vector.load %arg6[%c2, %c0_18] : memref<8x256xf32, #tpu.memory_space<vmem>>, vector<1x256xf32>
    %33 = vector.broadcast %32 : vector<1x256xf32> to vector<24x256xf32>
    %34 = arith.mulf %31, %33 : vector<24x256xf32>
    %c2_19 = arith.constant 2 : index
    %c0_20 = arith.constant 0 : index
    %c0_21 = arith.constant 0 : index
    %35 = vector.load %arg4[%c2_19, %c0_20, %c0_21] : memref<9x24x1xf32, #tpu.memory_space<vmem>>, vector<1x24x1xf32>
    %36 = vector.shape_cast %35 : vector<1x24x1xf32> to vector<24x1xf32>
    %37 = vector.broadcast %36 : vector<24x1xf32> to vector<24x256xf32>
    %38 = arith.mulf %34, %37 : vector<24x256xf32>
    %39 = arith.addf %30, %38 : vector<24x256xf32>
    %c1_i32 = arith.constant 1 : i32
    %40 = tpu.dynamic_rotate %8 by %c1_i32 dim 1 : vector<24x256xf32>, i32 -> vector<24x256xf32>
    %c3 = arith.constant 3 : index
    %c0_22 = arith.constant 0 : index
    %41 = vector.load %arg6[%c3, %c0_22] : memref<8x256xf32, #tpu.memory_space<vmem>>, vector<1x256xf32>
    %42 = vector.broadcast %41 : vector<1x256xf32> to vector<24x256xf32>
    %43 = arith.mulf %40, %42 : vector<24x256xf32>
    %c3_23 = arith.constant 3 : index
    %c0_24 = arith.constant 0 : index
    %c0_25 = arith.constant 0 : index
    %44 = vector.load %arg4[%c3_23, %c0_24, %c0_25] : memref<9x24x1xf32, #tpu.memory_space<vmem>>, vector<1x24x1xf32>
    %45 = vector.shape_cast %44 : vector<1x24x1xf32> to vector<24x1xf32>
    %46 = vector.broadcast %45 : vector<24x1xf32> to vector<24x256xf32>
    %47 = arith.mulf %43, %46 : vector<24x256xf32>
    %48 = arith.addf %39, %47 : vector<24x256xf32>
    %c255_i32 = arith.constant 255 : i32
    %49 = tpu.dynamic_rotate %8 by %c255_i32 dim 1 : vector<24x256xf32>, i32 -> vector<24x256xf32>
    %c4_26 = arith.constant 4 : index
    %c0_27 = arith.constant 0 : index
    %50 = vector.load %arg6[%c4_26, %c0_27] : memref<8x256xf32, #tpu.memory_space<vmem>>, vector<1x256xf32>
    %51 = vector.broadcast %50 : vector<1x256xf32> to vector<24x256xf32>
    %52 = arith.mulf %49, %51 : vector<24x256xf32>
    %c5 = arith.constant 5 : index
    %c0_28 = arith.constant 0 : index
    %c0_29 = arith.constant 0 : index
    %53 = vector.load %arg4[%c5, %c0_28, %c0_29] : memref<9x24x1xf32, #tpu.memory_space<vmem>>, vector<1x24x1xf32>
    %54 = vector.shape_cast %53 : vector<1x24x1xf32> to vector<24x1xf32>
    %55 = vector.broadcast %54 : vector<24x1xf32> to vector<24x256xf32>
    %56 = arith.mulf %52, %55 : vector<24x256xf32>
    %57 = arith.addf %48, %56 : vector<24x256xf32>
    %c241_i32 = arith.constant 241 : i32
    %58 = tpu.dynamic_rotate %8 by %c241_i32 dim 1 : vector<24x256xf32>, i32 -> vector<24x256xf32>
    %c5_30 = arith.constant 5 : index
    %c0_31 = arith.constant 0 : index
    %59 = vector.load %arg6[%c5_30, %c0_31] : memref<8x256xf32, #tpu.memory_space<vmem>>, vector<1x256xf32>
    %60 = vector.broadcast %59 : vector<1x256xf32> to vector<24x256xf32>
    %61 = arith.mulf %58, %60 : vector<24x256xf32>
    %c6 = arith.constant 6 : index
    %c0_32 = arith.constant 0 : index
    %c0_33 = arith.constant 0 : index
    %62 = vector.load %arg4[%c6, %c0_32, %c0_33] : memref<9x24x1xf32, #tpu.memory_space<vmem>>, vector<1x24x1xf32>
    %63 = vector.shape_cast %62 : vector<1x24x1xf32> to vector<24x1xf32>
    %64 = vector.broadcast %63 : vector<24x1xf32> to vector<24x256xf32>
    %65 = arith.mulf %61, %64 : vector<24x256xf32>
    %66 = arith.addf %57, %65 : vector<24x256xf32>
    %c240_i32 = arith.constant 240 : i32
    %67 = tpu.dynamic_rotate %8 by %c240_i32 dim 1 : vector<24x256xf32>, i32 -> vector<24x256xf32>
    %c6_34 = arith.constant 6 : index
    %c0_35 = arith.constant 0 : index
    %68 = vector.load %arg6[%c6_34, %c0_35] : memref<8x256xf32, #tpu.memory_space<vmem>>, vector<1x256xf32>
    %69 = vector.broadcast %68 : vector<1x256xf32> to vector<24x256xf32>
    %70 = arith.mulf %67, %69 : vector<24x256xf32>
    %c7 = arith.constant 7 : index
    %c0_36 = arith.constant 0 : index
    %c0_37 = arith.constant 0 : index
    %71 = vector.load %arg4[%c7, %c0_36, %c0_37] : memref<9x24x1xf32, #tpu.memory_space<vmem>>, vector<1x24x1xf32>
    %72 = vector.shape_cast %71 : vector<1x24x1xf32> to vector<24x1xf32>
    %73 = vector.broadcast %72 : vector<24x1xf32> to vector<24x256xf32>
    %74 = arith.mulf %70, %73 : vector<24x256xf32>
    %75 = arith.addf %66, %74 : vector<24x256xf32>
    %c239_i32 = arith.constant 239 : i32
    %76 = tpu.dynamic_rotate %8 by %c239_i32 dim 1 : vector<24x256xf32>, i32 -> vector<24x256xf32>
    %c7_38 = arith.constant 7 : index
    %c0_39 = arith.constant 0 : index
    %77 = vector.load %arg6[%c7_38, %c0_39] : memref<8x256xf32, #tpu.memory_space<vmem>>, vector<1x256xf32>
    %78 = vector.broadcast %77 : vector<1x256xf32> to vector<24x256xf32>
    %79 = arith.mulf %76, %78 : vector<24x256xf32>
    %c8 = arith.constant 8 : index
    %c0_40 = arith.constant 0 : index
    %c0_41 = arith.constant 0 : index
    %80 = vector.load %arg4[%c8, %c0_40, %c0_41] : memref<9x24x1xf32, #tpu.memory_space<vmem>>, vector<1x24x1xf32>
    %81 = vector.shape_cast %80 : vector<1x24x1xf32> to vector<24x1xf32>
    %82 = vector.broadcast %81 : vector<24x1xf32> to vector<24x256xf32>
    %83 = arith.mulf %79, %82 : vector<24x256xf32>
    %84 = arith.addf %75, %83 : vector<24x256xf32>
    %c0_42 = arith.constant 0 : index
    %c0_43 = arith.constant 0 : index
    %85 = vector.load %arg5[%c0_42, %c0_43] : memref<24x1xf32, #tpu.memory_space<vmem>>, vector<24x1xf32>
    %86 = vector.broadcast %85 : vector<24x1xf32> to vector<24x256xf32>
    %87 = arith.addf %84, %86 : vector<24x256xf32>
    %cst_44 = arith.constant 0.000000e+00 : f32
    %88 = vector.broadcast %cst_44 : f32 to vector<24x256xf32>
    %89 = arith.maximumf %87, %88 : vector<24x256xf32>
    %c0_45 = arith.constant 0 : index
    %c0_46 = arith.constant 0 : index
    %90 = vector.load %arg7[%c0_45, %c0_46] : memref<4x24xf32, #tpu.memory_space<vmem>>, vector<4x24xf32>
    %cst_47 = arith.constant dense<0.000000e+00> : vector<4x256xf32>
    %91 = tpu.matmul %90, %89, %cst_47 {dimension_numbers = #tpu.dot_dimension_numbers<[1], [0], [0], [1], [0, 0, 1, 1], [], []>} : vector<4x24xf32>, vector<24x256xf32>, vector<4x256xf32> -> vector<4x256xf32>
    %c0_48 = arith.constant 0 : index
    %c0_49 = arith.constant 0 : index
    %92 = vector.load %arg8[%c0_48, %c0_49] : memref<4x1xf32, #tpu.memory_space<vmem>>, vector<4x1xf32>
    %93 = vector.broadcast %92 : vector<4x1xf32> to vector<4x256xf32>
    %94 = arith.addf %91, %93 : vector<4x256xf32>
    %95 = arith.addf %94, %1 : vector<4x256xf32>
    %c0_50 = arith.constant 0 : index
    %c0_51 = arith.constant 0 : index
    %c0_52 = arith.constant 0 : index
    %96 = vector.load %arg9[%c0_50, %c0_51, %c0_52] : memref<1x4x256xf32, #tpu.memory_space<vmem>>, vector<1x4x256xf32>
    %97 = vector.shape_cast %96 : vector<1x4x256xf32> to vector<4x256xf32>
    %98 = vector.shape_cast %95 : vector<4x256xf32> to vector<1x4x256xf32>
    tpu.vector_store %arg9[%c0_50, %c0_51, %c0_52], %98 {strides = array<i32>} : memref<1x4x256xf32, #tpu.memory_space<vmem>>, vector<1x4x256xf32>,
    return
  }
  func.func @transform_0(%arg0: i32) -> (i32, i32, i32) {
    %c0_i32 = arith.constant 0 : i32
    %c0_i32_0 = arith.constant 0 : i32
    %c0_i32_1 = arith.constant 0 : i32
    return %arg0, %c0_i32, %c0_i32_0 : i32, i32, i32
  }
  func.func @transform_1(%arg0: i32) -> (i32, i32) {
    %c0_i32 = arith.constant 0 : i32
    %c0_i32_0 = arith.constant 0 : i32
    %c0_i32_1 = arith.constant 0 : i32
    return %c0_i32, %c0_i32_0 : i32, i32
  }
  func.func @transform_2(%arg0: i32) -> (i32, i32) {
    %c0_i32 = arith.constant 0 : i32
    %c0_i32_0 = arith.constant 0 : i32
    %c0_i32_1 = arith.constant 0 : i32
    return %c0_i32, %c0_i32_0 : i32, i32
  }
  func.func @transform_3(%arg0: i32) -> (i32, i32, i32) {
    %c0_i32 = arith.constant 0 : i32
    %c0_i32_0 = arith.constant 0 : i32
    %c0_i32_1 = arith.constant 0 : i32
    %c0_i32_2 = arith.constant 0 : i32
    return %c0_i32, %c0_i32_0, %c0_i32_1 : i32, i32, i32
  }
  func.func @transform_4(%arg0: i32) -> (i32, i32) {
    %c0_i32 = arith.constant 0 : i32
    %c0_i32_0 = arith.constant 0 : i32
    %c0_i32_1 = arith.constant 0 : i32
    return %c0_i32, %c0_i32_0 : i32, i32
  }
  func.func @transform_5(%arg0: i32) -> (i32, i32) {
    %c0_i32 = arith.constant 0 : i32
    %c0_i32_0 = arith.constant 0 : i32
    %c0_i32_1 = arith.constant 0 : i32
    return %c0_i32, %c0_i32_0 : i32, i32
  }
  func.func @transform_6(%arg0: i32) -> (i32, i32) {
    %c0_i32 = arith.constant 0 : i32
    %c0_i32_0 = arith.constant 0 : i32
    %c0_i32_1 = arith.constant 0 : i32
    return %c0_i32, %c0_i32_0 : i32, i32
  }
  func.func @transform_7(%arg0: i32) -> (i32, i32) {
    %c0_i32 = arith.constant 0 : i32
    %c0_i32_0 = arith.constant 0 : i32
    %c0_i32_1 = arith.constant 0 : i32
    return %c0_i32, %c0_i32_0 : i32, i32
  }
  func.func @transform_8(%arg0: i32) -> (i32, i32, i32) {
    %c0_i32 = arith.constant 0 : i32
    %c0_i32_0 = arith.constant 0 : i32
    %c0_i32_1 = arith.constant 0 : i32
    return %arg0, %c0_i32, %c0_i32_0 : i32, i32, i32
  }
}

</mosaic_0001>

<llo_original>
// kernel: _forward.1
$region0: #{_forward.1}
  #allocation0 [shape = 'u32[]', space=smem, size = 0x4, offset = 0x4, fixed_abs, tag = 'smem constant byte address 0x4 - core index']
  #allocation1 [shape = 'u32[144,128]{1,0:T(1,128)}', space=vmem, size = 0x12000, scoped, tag = 'internal scratch']
  %s0 = inlined_call_operand.vmem [shape: f32[2,4,256], index: 0, kind: input, shape index: {}]
  %s1 = inlined_call_operand.vmem [shape: f32[24,4], index: 1, kind: input, shape index: {}]
  %s2 = inlined_call_operand.vmem [shape: f32[24,1], index: 2, kind: input, shape index: {}]
  %s3 = inlined_call_operand.vmem [shape: f32[9,24,1], index: 3, kind: input, shape index: {}]
  %s4 = inlined_call_operand.vmem [shape: f32[24,1], index: 4, kind: input, shape index: {}]
  %s5 = inlined_call_operand.vmem [shape: f32[8,256], index: 5, kind: input, shape index: {}]
  %s6 = inlined_call_operand.vmem [shape: f32[4,24], index: 6, kind: input, shape index: {}]
  %s7 = inlined_call_operand.vmem [shape: f32[4,1], index: 7, kind: input, shape index: {}]
  %s8 = inlined_call_operand.vmem [shape: f32[2,4,256], index: 8, kind: output, shape index: {}]
  %s9 = sld [smem:[#allocation0]]
  $region65: #{_forward.1} parent=0
    _
  %s11 = ssub.s32 1, %s9
  %s12 = scalar_select 0, %s11, %s9
  loop: start=0, step=1, limit=4
  $region2: #{_forward.1} parent=0 // loop_pre_header
    _
  $region3: #{_forward.1} parent=0 // loop_header
    %s14 = sphi 0, %s18
    %p15 = scmp.ge.s32.totalorder %s14, 4
    %s24 = sphi 0, %s26
    %s27 = sphi 0, %s24
    %s28 = sphi 0, %s27
    %s44 = sphi 0, %s28
    %s48 = sphi 0, %s48
    %s50 = sphi 0, %s48
    %s51 = sphi 0, %s50
    %s65 = sphi 0, %s51
    %s69 = sphi 0, %s69
    %s71 = sphi 0, %s69
    %s72 = sphi 0, %s71
    %s86 = sphi 0, %s72
    %s90 = sphi 0, %s90
    %s92 = sphi 0, %s90
    %s93 = sphi 0, %s92
    %s107 = sphi 0, %s93
    %s111 = sphi 0, %s111
    %s113 = sphi 0, %s111
    %s114 = sphi 0, %s113
    %s128 = sphi 0, %s114
    %s132 = sphi 0, %s132
    %s134 = sphi 0, %s132
    %s135 = sphi 0, %s134
    %s149 = sphi 0, %s135
    %s153 = sphi 0, %s153
    %s155 = sphi 0, %s153
    %s156 = sphi 0, %s155
    %s170 = sphi 0, %s156
    %s174 = sphi 0, %s174
    %s176 = sphi 0, %s174
    %s177 = sphi 0, %s176
    %s191 = sphi 0, %s177
    %s197 = sphi 0, %s199
    %s200 = sphi 0, %s197
    %s201 = sphi 0, %s200
    %s217 = sphi 0, %s201
  $region4: #{_forward.1} parent=0 // loop_header_branch
    %17 = sbr.rel (%p15) target = $region8
  $region5: #{_forward.1} parent=0 // loop_body
    %s19 = ssub.s32 %s14, 1
    %s20 = ssub.s32 %s14, 2
    %s21 = sadd.s32 %s14, 1
    %s22 = ssub.s32 %s14, %s21
    %p23 = scmp.eq.s32.totalorder %s22, 0
    %s25 = sadd.s32 %s24, 1
    %s26 = scalar_select %p23, %s24, %s25
    %p29 = pneg %p23
    %p30 = scmp.eq.s32.totalorder %s14, 1
    %p31 = por %p29, %p30
    %p32 = scmp.ne.s32.totalorder %s24, %s27
    %p33 = scmp.eq.s32.totalorder %s14, 0
    %p34 = por %p32, %p33
    %p35 = scmp.ne.s32.totalorder %s24, %s27
    %p36 = scmp.eq.s32.totalorder %s19, 1
    %p37 = por %p35, %p36
    %p38 = scmp.ne.s32.totalorder %s27, %s28
    %p39 = scmp.eq.s32.totalorder %s19, 0
    %p40 = por %p38, %p39
    %p41 = scmp.ne.s32.totalorder %s27, %s28
    %p42 = scmp.eq.s32.totalorder %s20, 1
    %p43 = por %p41, %p42
    %p45 = scmp.ne.s32.totalorder %s28, %s44
    %p46 = scmp.eq.s32.totalorder %s20, 0
    %p47 = por %p45, %p46
    %s49 = sadd.s32 %s48, 1
    %p52 = scmp.eq.s32.totalorder %s14, 1
    %p53 = scmp.ne.s32.totalorder %s48, %s50
    %p54 = scmp.eq.s32.totalorder %s14, 0
    %p55 = por %p53, %p54
    %p56 = scmp.ne.s32.totalorder %s48, %s50
    %p57 = scmp.eq.s32.totalorder %s19, 1
    %p58 = por %p56, %p57
    %p59 = scmp.ne.s32.totalorder %s50, %s51
    %p60 = scmp.eq.s32.totalorder %s19, 0
    %p61 = por %p59, %p60
    %p62 = scmp.ne.s32.totalorder %s50, %s51
    %p63 = scmp.eq.s32.totalorder %s20, 1
    %p64 = por %p62, %p63
    %p66 = scmp.ne.s32.totalorder %s51, %s65
    %p67 = scmp.eq.s32.totalorder %s20, 0
    %p68 = por %p66, %p67
    %s70 = sadd.s32 %s69, 1
    %p73 = scmp.eq.s32.totalorder %s14, 1
    %p74 = scmp.ne.s32.totalorder %s69, %s71
    %p75 = scmp.eq.s32.totalorder %s14, 0
    %p76 = por %p74, %p75
    %p77 = scmp.ne.s32.totalorder %s69, %s71
    %p78 = scmp.eq.s32.totalorder %s19, 1
    %p79 = por %p77, %p78
    %p80 = scmp.ne.s32.totalorder %s71, %s72
    %p81 = scmp.eq.s32.totalorder %s19, 0
    %p82 = por %p80, %p81
    %p83 = scmp.ne.s32.totalorder %s71, %s72
    %p84 = scmp.eq.s32.totalorder %s20, 1
    %p85 = por %p83, %p84
    %p87 = scmp.ne.s32.totalorder %s72, %s86
    %p88 = scmp.eq.s32.totalorder %s20, 0
    %p89 = por %p87, %p88
    %s91 = sadd.s32 %s90, 1
    %p94 = scmp.eq.s32.totalorder %s14, 1
    %p95 = scmp.ne.s32.totalorder %s90, %s92
    %p96 = scmp.eq.s32.totalorder %s14, 0
    %p97 = por %p95, %p96
    %p98 = scmp.ne.s32.totalorder %s90, %s92
    %p99 = scmp.eq.s32.totalorder %s19, 1
    %p100 = por %p98, %p99
    %p101 = scmp.ne.s32.totalorder %s92, %s93
    %p102 = scmp.eq.s32.totalorder %s19, 0
    %p103 = por %p101, %p102
    %p104 = scmp.ne.s32.totalorder %s92, %s93
    %p105 = scmp.eq.s32.totalorder %s20, 1
    %p106 = por %p104, %p105
    %p108 = scmp.ne.s32.totalorder %s93, %s107
    %p109 = scmp.eq.s32.totalorder %s20, 0
    %p110 = por %p108, %p109
    %s112 = sadd.s32 %s111, 1
    %p115 = scmp.eq.s32.totalorder %s14, 1
    %p116 = scmp.ne.s32.totalorder %s111, %s113
    %p117 = scmp.eq.s32.totalorder %s14, 0
    %p118 = por %p116, %p117
    %p119 = scmp.ne.s32.totalorder %s111, %s113
    %p120 = scmp.eq.s32.totalorder %s19, 1
    %p121 = por %p119, %p120
    %p122 = scmp.ne.s32.totalorder %s113, %s114
    %p123 = scmp.eq.s32.totalorder %s19, 0
    %p124 = por %p122, %p123
    %p125 = scmp.ne.s32.totalorder %s113, %s114
    %p126 = scmp.eq.s32.totalorder %s20, 1
    %p127 = por %p125, %p126
    %p129 = scmp.ne.s32.totalorder %s114, %s128
    %p130 = scmp.eq.s32.totalorder %s20, 0
    %p131 = por %p129, %p130
    %s133 = sadd.s32 %s132, 1
    %p136 = scmp.eq.s32.totalorder %s14, 1
    %p137 = scmp.ne.s32.totalorder %s132, %s134
    %p138 = scmp.eq.s32.totalorder %s14, 0
    %p139 = por %p137, %p138
    %p140 = scmp.ne.s32.totalorder %s132, %s134
    %p141 = scmp.eq.s32.totalorder %s19, 1
    %p142 = por %p140, %p141
    %p143 = scmp.ne.s32.totalorder %s134, %s135
    %p144 = scmp.eq.s32.totalorder %s19, 0
    %p145 = por %p143, %p144
    %p146 = scmp.ne.s32.totalorder %s134, %s135
    %p147 = scmp.eq.s32.totalorder %s20, 1
    %p148 = por %p146, %p147
    %p150 = scmp.ne.s32.totalorder %s135, %s149
    %p151 = scmp.eq.s32.totalorder %s20, 0
    %p152 = por %p150, %p151
    %s154 = sadd.s32 %s153, 1
    %p157 = scmp.eq.s32.totalorder %s14, 1
    %p158 = scmp.ne.s32.totalorder %s153, %s155
    %p159 = scmp.eq.s32.totalorder %s14, 0
    %p160 = por %p158, %p159
    %p161 = scmp.ne.s32.totalorder %s153, %s155
    %p162 = scmp.eq.s32.totalorder %s19, 1
    %p163 = por %p161, %p162
    %p164 = scmp.ne.s32.totalorder %s155, %s156
    %p165 = scmp.eq.s32.totalorder %s19, 0
    %p166 = por %p164, %p165
    %p167 = scmp.ne.s32.totalorder %s155, %s156
    %p168 = scmp.eq.s32.totalorder %s20, 1
    %p169 = por %p167, %p168
    %p171 = scmp.ne.s32.totalorder %s156, %s170
    %p172 = scmp.eq.s32.totalorder %s20, 0
    %p173 = por %p171, %p172
    %s175 = sadd.s32 %s174, 1
    %p178 = scmp.eq.s32.totalorder %s14, 1
    %p179 = scmp.ne.s32.totalorder %s174, %s176
    %p180 = scmp.eq.s32.totalorder %s14, 0
    %p181 = por %p179, %p180
    %p182 = scmp.ne.s32.totalorder %s174, %s176
    %p183 = scmp.eq.s32.totalorder %s19, 1
    %p184 = por %p182, %p183
    %p185 = scmp.ne.s32.totalorder %s176, %s177
    %p186 = scmp.eq.s32.totalorder %s19, 0
    %p187 = por %p185, %p186
    %p188 = scmp.ne.s32.totalorder %s176, %s177
    %p189 = scmp.eq.s32.totalorder %s20, 1
    %p190 = por %p188, %p189
    %p192 = scmp.ne.s32.totalorder %s177, %s191
    %p193 = scmp.eq.s32.totalorder %s20, 0
    %p194 = por %p192, %p193
    %s195 = ssub.s32 %s14, %s21
    %p196 = scmp.eq.s32.totalorder %s195, 0
    %s198 = sadd.s32 %s197, 1
    %s199 = scalar_select %p196, %s197, %s198
    %p202 = pneg %p196
    %p203 = scmp.eq.s32.totalorder %s14, 1
    %p204 = por %p202, %p203
    %p205 = scmp.ne.s32.totalorder %s197, %s200
    %p206 = scmp.eq.s32.totalorder %s14, 0
    %p207 = por %p205, %p206
    %p208 = scmp.ne.s32.totalorder %s197, %s200
    %p209 = scmp.eq.s32.totalorder %s19, 1
    %p210 = por %p208, %p209
    %p211 = scmp.ne.s32.totalorder %s200, %s201
    %p212 = scmp.eq.s32.totalorder %s19, 0
    %p213 = por %p211, %p212
    %p214 = scmp.ne.s32.totalorder %s200, %s201
    %p215 = scmp.eq.s32.totalorder %s20, 1
    %p216 = por %p214, %p215
    %p218 = scmp.ne.s32.totalorder %s201, %s217
    %p219 = scmp.eq.s32.totalorder %s20, 0
    %p220 = por %p218, %p219
    %p221 = scmp.le.s32.totalorder 1, %s14
    %p222 = scmp.lt.s32.totalorder %s14, 3
    %p223 = pnand %p221, %p222
    %p224 = pneg %p223
    // Predicated region
    $region9: #{_forward.1} parent=5 // pred_check
      _
    $region10: #{_forward.1} parent=5 // pred_check_branch
      %226 = sbr.rel (%p223) target = $region12
    $region11: #{_forward.1} parent=5 // pred_region
      %s227 = ssub.s32 %s14, 1
      // Predicated region
      $region13: #{_forward.1} parent=11 // pred_check
        %p228 = pneg %p61
      $region14: #{_forward.1} parent=11 // pred_check_branch
        %230 = sbr.rel (%p228) target = $region16
      $region15: #{_forward.1} parent=11 // pred_region
        _
      $region16: #{_forward.1} parent=11 // pred_fallthru
        _
      // Predicated region
      $region17: #{_forward.1} parent=11 // pred_check
        %p231 = pneg %p82
      $region18: #{_forward.1} parent=11 // pred_check_branch
        %233 = sbr.rel (%p231) target = $region20
      $region19: #{_forward.1} parent=11 // pred_region
        _
      $region20: #{_forward.1} parent=11 // pred_fallthru
        _
      // Predicated region
      $region21: #{_forward.1} parent=11 // pred_check
        %p234 = pneg %p103
      $region22: #{_forward.1} parent=11 // pred_check_branch
        %236 = sbr.rel (%p234) target = $region24
      $region23: #{_forward.1} parent=11 // pred_region
        _
      $region24: #{_forward.1} parent=11 // pred_fallthru
        _
      // Predicated region
      $region25: #{_forward.1} parent=11 // pred_check
        %p237 = pneg %p124
      $region26: #{_forward.1} parent=11 // pred_check_branch
        %239 = sbr.rel (%p237) target = $region28
      $region27: #{_forward.1} parent=11 // pred_region
        _
      $region28: #{_forward.1} parent=11 // pred_fallthru
        _
      // Predicated region
      $region29: #{_forward.1} parent=11 // pred_check
        %p240 = pneg %p145
      $region30: #{_forward.1} parent=11 // pred_check_branch
        %242 = sbr.rel (%p240) target = $region32
      $region31: #{_forward.1} parent=11 // pred_region
        _
      $region32: #{_forward.1} parent=11 // pred_fallthru
        _
      // Predicated region
      $region33: #{_forward.1} parent=11 // pred_check
        %p243 = pneg %p166
      $region34: #{_forward.1} parent=11 // pred_check_branch
        %245 = sbr.rel (%p243) target = $region36
      $region35: #{_forward.1} parent=11 // pred_region
        _
      $region36: #{_forward.1} parent=11 // pred_fallthru
        _
      // Predicated region
      $region37: #{_forward.1} parent=11 // pred_check
        %p246 = pneg %p187
      $region38: #{_forward.1} parent=11 // pred_check_branch
        %248 = sbr.rel (%p246) target = $region40
      $region39: #{_forward.1} parent=11 // pred_region
        _
      $region40: #{_forward.1} parent=11 // pred_fallthru
        _
    $region12: #{_forward.1} parent=5 // pred_fallthru
      _
    %p249 = scmp.lt.s32.totalorder %s14, 2
    // Predicated region
    $region41: #{_forward.1} parent=5 // pred_check
      %p250 = pneg %p249
    $region42: #{_forward.1} parent=5 // pred_check_branch
      %252 = sbr.rel (%p250) target = $region44
    $region43: #{_forward.1} parent=5 // pred_region
      // Predicated region
      $region45: #{_forward.1} parent=43 // pred_check
        %p253 = pneg %p34
      $region46: #{_forward.1} parent=43 // pred_check_branch
        %255 = sbr.rel (%p253) target = $region48
      $region47: #{_forward.1} parent=43 // pred_region
        %p256 = scmp.lt.s32.totalorder %s14, 1
        %s257 = scalar_select %p256, %s14, 1
        %s258 = smul.addr %s257, 2
        %s259 = smul.addr %s258, 4
        %s260 = scalar_lea.vmem %s0, %s259
      $region48: #{_forward.1} parent=43 // pred_fallthru
        _
    $region44: #{_forward.1} parent=5 // pred_fallthru
      _
    %p261 = scmp.le.s32.totalorder 1, %s14
    %p262 = scmp.lt.s32.totalorder %s14, 3
    %p263 = pnand %p261, %p262
    %p264 = pneg %p263
    // Predicated region
    $region49: #{_forward.1} parent=5 // pred_check
      _
    $region50: #{_forward.1} parent=5 // pred_check_branch
      %266 = sbr.rel (%p263) target = $region52
    $region51: #{_forward.1} parent=5 // pred_region
      %s267 = ssub.s32 %s14, 1
      %p268 = scmp.lt.s32.totalorder %s19, 1
      %s269 = scalar_select %p268, %s19, 1
      %s270 = smul.addr %s269, 2
      %s271 = smul.addr %s270, 4
      %s272 = scalar_lea.vmem %s0, %s271
      %p273 = pneg %p40
      %p274 = pneg %p37
      %p275 = pneg %p61
      %p276 = pneg %p58
      %p277 = pneg %p82
      %p278 = pneg %p79
      %p279 = pneg %p103
      %p280 = pneg %p100
      %p281 = pneg %p124
      %p282 = pneg %p121
      %p283 = pneg %p145
      %p284 = pneg %p142
      %p285 = pneg %p166
      %p286 = pneg %p163
      %p287 = pneg %p187
      %p288 = pneg %p184
      %p289 = pneg %p213
      %p290 = pneg %p210
      %p291 = scmp.lt.s32.totalorder %s19, 1
      %s292 = scalar_select %p291, %s19, 1
      %s293 = smul.addr %s292, 2
      %s294 = smul.addr %s293, 4
      %s295 = scalar_lea.vmem %s8, %s294
      %p296 = scmp.lt.s32.totalorder %s19, 1
      %s297 = scalar_select %p296, %s19, 1
      %s298 = smul.addr %s297, 2
      %s299 = smul.addr %s298, 4
      %s300 = scalar_lea.vmem %s0, %s299
      %p301 = scmp.lt.s32.totalorder %s19, 1
      %s302 = scalar_select %p301, %s19, 1
      %s303 = smul.addr %s302, 2
      %s304 = smul.addr %s303, 4
      %s305 = scalar_lea.vmem %s8, %s304
      %v306 = vld [vmem:[%s300] sm:$0xff]
      %v307 = vld [vmem:[%s1] sm:$0xff]
      %v308 = vld [vmem:[%s1 + $0x8] sm:$0xff]
      %v309 = vld [vmem:[%s1 + $0x10] sm:$0xff]
      %v310 = vld [vmem:[%s2] sm:$0xff]
      %v311 = vld [vmem:[%s2 + $0x8] sm:$0xff]
      %v312 = vld [vmem:[%s2 + $0x10] sm:$0xff]
      %314 = vset.pattern.permute.xlu0 0
      %315 = vperm.xlu0 %314, %v310
      %v316 = vpop.permute.xlu0 %315
      %319 = vset.pattern.permute.xlu0 0
      %320 = vperm.xlu0 %319, %v311
      %v321 = vpop.permute.xlu0 %320
      %324 = vset.pattern.permute.xlu0 0
      %325 = vperm.xlu0 %324, %v312
      %v326 = vpop.permute.xlu0 %325
      %v329 = vcombine.high %v306, %v306
      %vm330 = vcmask 31744
      %v332 = vsel %vm330, %v307, 0
      %v335 = vsel %vm330, %v308, 0
      %v338 = vsel %vm330, %v309, 0
      %vm340 = vcmask 1043456
      %v341 = vsel %vm340, %v306, 0
      %v343 = vsel %vm340, %v329, 0
      %345 = vmatprep.subr.mxu0 0.0
      %346 = vmatpush1.msra.mxu0 0.0
      %347 = vmatprep.subr.mxu0 0.0
      %348 = vmatpush1.msra.mxu0 0.0
      %349 = vmatprep.subr.mxu0 0.0
      %350 = vmatpush1.msra.mxu0 0.0
      %351 = vmatprep.subr.mxu0 0.0
      %352 = vmatpush1.msra.mxu0 0.0
      %353 = vmatprep.subr.mxu0 0.0
      %354 = vmatpush1.msra.mxu0 0.0
      %355 = vmatprep.subr.mxu0 0.0
      %356 = vmatpush1.msra.mxu0 0.0
      %357 = vmatprep.subr.mxu0 0.0
      %358 = vmatpush1.msra.mxu0 0.0
      %359 = vmatprep.subr.mxu0 0.0
      %360 = vmatpush1.msra.mxu0 0.0
      %361 = vmatprep.subr.mxu0 0.0
      %362 = vmatpush1.msra.mxu0 0.0
      %363 = vmatprep.subr.mxu0 0.0
      %364 = vmatpush1.msra.mxu0 0.0
      %365 = vmatprep.subr.mxu0 0.0
      %366 = vmatpush1.msra.mxu0 0.0
      %367 = vmatprep.subr.mxu0 0.0
      %368 = vmatpush1.msra.mxu0 0.0
      %369 = vmatprep.subr.mxu0 0.0
      %370 = vmatpush1.msra.mxu0 0.0
      %371 = vmatprep.subr.mxu0 0.0
      %372 = vmatpush1.msra.mxu0 0.0
      %373 = vmatprep.subr.mxu0 0.0
      %374 = vmatpush1.msra.mxu0 0.0
      %375 = vmatprep.subr.mxu0 %v343
      %376 = vmatpush1.msra.mxu0 %v341
      %377 = vmatprep.subr.mxu0 0.0
      %378 = vmatpush2.msra.mxu0 0.0
      %379 = vmatprep.subr.mxu0 0.0
      %380 = vmatpush2.msra.mxu0 0.0
      %381 = vmatprep.subr.mxu0 0.0
      %382 = vmatpush2.msra.mxu0 0.0
      %383 = vmatprep.subr.mxu0 0.0
      %384 = vmatpush2.msra.mxu0 0.0
      %385 = vmatprep.subr.mxu0 0.0
      %386 = vmatpush2.msra.mxu0 0.0
      %387 = vmatprep.subr.mxu0 0.0
      %388 = vmatpush2.msra.mxu0 0.0
      %389 = vmatprep.subr.mxu0 0.0
      %390 = vmatpush2.msra.mxu0 0.0
      %391 = vmatprep.subr.mxu0 0.0
      %392 = vmatpush2.msra.mxu0 0.0
      %393 = vmatprep.subr.mxu0 0.0
      %394 = vmatpush2.msra.mxu0 0.0
      %395 = vmatprep.subr.mxu0 0.0
      %396 = vmatpush2.msra.mxu0 0.0
      %397 = vmatprep.subr.mxu0 0.0
      %398 = vmatpush2.msra.mxu0 0.0
      %399 = vmatprep.subr.mxu0 0.0
      %400 = vmatpush2.msra.mxu0 0.0
      %401 = vmatprep.subr.mxu0 0.0
      %402 = vmatpush2.msra.mxu0 0.0
      %403 = vmatprep.subr.mxu0 0.0
      %404 = vmatpush2.msra.mxu0 0.0
      %405 = vmatprep.subr.mxu0 0.0
      %406 = vmatpush2.msra.mxu0 0.0
      %407 = vmatprep.subr.mxu0 0.0
      %408 = vmatpush2.msra.mxu0 0.0
      %409 = vmatprep.mubr.f32.mxu0 0.0
      %410 = vmatmul.mubr.f32.gmra.mxu0 %v332
      %v411 = vpop.f32.mrf.mxu0
      %v412 = vadd.f32 %v316, %v411
      %v413 = vpop.f32.mrf.mxu0
      %v414 = vadd.f32 %v316, %v413
      %415 = vmatprep.mubr.f32.mxu0 0.0
      %416 = vmatmul.mubr.f32.gmra.mxu0 %v335
      %v417 = vpop.f32.mrf.mxu0
      %v418 = vadd.f32 %v321, %v417
      %v419 = vpop.f32.mrf.mxu0
      %v420 = vadd.f32 %v321, %v419
      %421 = vmatprep.mubr.f32.mxu0 0.0
      %422 = vmatmul.mubr.f32.gmra.mxu0 %v338
      %v423 = vpop.f32.mrf.mxu0
      %v424 = vadd.f32 %v326, %v423
      %v425 = vpop.f32.mrf.mxu0
      %v426 = vadd.f32 %v326, %v425
      %427 = vdwg.mxu0
      %v428 = vmax.f32 %v412, 0.0
      %v429 = vmax.f32 %v414, 0.0
      %v430 = vmax.f32 %v418, 0.0
      %v431 = vmax.f32 %v420, 0.0
      %v432 = vmax.f32 %v424, 0.0
      %v433 = vmax.f32 %v426, 0.0
      %s434 = scalar_lea.vmem %s3, 96
      %v435 = vld [vmem:[%s434] sm:$0xff]
      %v436 = vld [vmem:[%s434 + $0x8] sm:$0xff]
      %v437 = vld [vmem:[%s434 + $0x10] sm:$0xff]
      %439 = vset.pattern.permute.xlu0 0
      %440 = vperm.xlu0 %439, %v435
      %v441 = vpop.permute.xlu0 %440
      %444 = vset.pattern.permute.xlu0 0
      %445 = vperm.xlu0 %444, %v436
      %v446 = vpop.permute.xlu0 %445
      %449 = vset.pattern.permute.xlu0 0
      %450 = vperm.xlu0 %449, %v437
      %v451 = vpop.permute.xlu0 %450
      %v453 = vmul.f32 %v428, %v441
      %v454 = vmul.f32 %v429, %v441
      %v455 = vmul.f32 %v430, %v446
      %v456 = vmul.f32 %v431, %v446
      %v457 = vmul.f32 %v432, %v451
      %v458 = vmul.f32 %v433, %v451
      %459 = vrot.lane.b32.xlu0 %v428, 17
      %v460 = vpop.permute.xlu0 %459
      %461 = vrot.lane.b32.xlu0 %v430, 17
      %v462 = vpop.permute.xlu0 %461
      %463 = vrot.lane.b32.xlu0 %v432, 17
      %v464 = vpop.permute.xlu0 %463
      %465 = vrot.lane.b32.xlu0 %v429, 17
      %v466 = vpop.permute.xlu0 %465
      %467 = vrot.lane.b32.xlu0 %v431, 17
      %v468 = vpop.permute.xlu0 %467
      %469 = vrot.lane.b32.xlu0 %v433, 17
      %v470 = vpop.permute.xlu0 %469
      %v471 = vlaneseq
      %v472 = vand.u32 %v471, 127
      %vm473 = vcmp.lt.s32.totalorder %v472, 17
      %v474 = vsel %vm473, %v460, %v466
      %v475 = vsel %vm473, %v462, %v468
      %v476 = vsel %vm473, %v464, %v470
      %v477 = vsel %vm473, %v466, %v460
      %v478 = vsel %vm473, %v468, %v462
      %v479 = vsel %vm473, %v470, %v464
      %v480 = vld [vmem:[%s5] ss:$8 sm:$0x3]
      %v482 = vlaneseq
      %v483 = vshrl.u32 %v482, 7
      %v484 = vsub.s32 0, %v483
      %v485 = vrot.slane %v480, %v484
      %v486 = vlaneseq
      %v487 = vshrl.u32 %v486, 7
      %v488 = vsub.s32 1, %v487
      %v489 = vrot.slane %v480, %v488
      %v492 = vmul.f32 %v477, %v485
      %v493 = vmul.f32 %v474, %v489
      %v494 = vmul.f32 %v478, %v485
      %v495 = vmul.f32 %v475, %v489
      %v496 = vmul.f32 %v479, %v485
      %v497 = vmul.f32 %v476, %v489
      %v498 = vld [vmem:[%s3] sm:$0xff]
      %v499 = vld [vmem:[%s3 + $0x8] sm:$0xff]
      %v500 = vld [vmem:[%s3 + $0x10] sm:$0xff]
      %502 = vset.pattern.permute.xlu0 0
      %503 = vperm.xlu0 %502, %v498
      %v504 = vpop.permute.xlu0 %503
      %507 = vset.pattern.permute.xlu0 0
      %508 = vperm.xlu0 %507, %v499
      %v509 = vpop.permute.xlu0 %508
      %512 = vset.pattern.permute.xlu0 0
      %513 = vperm.xlu0 %512, %v500
      %v514 = vpop.permute.xlu0 %513
      %v516 = vmul.f32 %v492, %v504
      %v517 = vmul.f32 %v493, %v504
      %v518 = vmul.f32 %v494, %v509
      %v519 = vmul.f32 %v495, %v509
      %v520 = vmul.f32 %v496, %v514
      %v521 = vmul.f32 %v497, %v514
      %v522 = vadd.f32 %v453, %v516
      %v523 = vadd.f32 %v454, %v517
      %v524 = vadd.f32 %v455, %v518
      %v525 = vadd.f32 %v456, %v519
      %v526 = vadd.f32 %v457, %v520
      %v527 = vadd.f32 %v458, %v521
      %528 = vrot.lane.b32.xlu0 %v428, 16
      %v529 = vpop.permute.xlu0 %528
      %530 = vrot.lane.b32.xlu0 %v430, 16
      %v531 = vpop.permute.xlu0 %530
      %532 = vrot.lane.b32.xlu0 %v432, 16
      %v533 = vpop.permute.xlu0 %532
      %534 = vrot.lane.b32.xlu0 %v429, 16
      %v535 = vpop.permute.xlu0 %534
      %536 = vrot.lane.b32.xlu0 %v431, 16
      %v537 = vpop.permute.xlu0 %536
      %538 = vrot.lane.b32.xlu0 %v433, 16
      %v539 = vpop.permute.xlu0 %538
      %vm540 = vcmp.lt.s32.totalorder %v472, 16
      %v541 = vsel %vm540, %v529, %v535
      %v542 = vsel %vm540, %v531, %v537
      %v543 = vsel %vm540, %v533, %v539
      %v544 = vsel %vm540, %v535, %v529
      %v545 = vsel %vm540, %v537, %v531
      %v546 = vsel %vm540, %v539, %v533
      %s547 = scalar_lea.vmem %s5, 1
      %v548 = vld [vmem:[%s547] ss:$8 sm:$0x3]
      %v550 = vlaneseq
      %v551 = vshrl.u32 %v550, 7
      %v552 = vsub.s32 0, %v551
      %v553 = vrot.slane %v548, %v552
      %v554 = vlaneseq
      %v555 = vshrl.u32 %v554, 7
      %v556 = vsub.s32 1, %v555
      %v557 = vrot.slane %v548, %v556
      %v560 = vmul.f32 %v544, %v553
      %v561 = vmul.f32 %v541, %v557
      %v562 = vmul.f32 %v545, %v553
      %v563 = vmul.f32 %v542, %v557
      %v564 = vmul.f32 %v546, %v553
      %v565 = vmul.f32 %v543, %v557
      %s566 = scalar_lea.vmem %s3, 24
      %v567 = vld [vmem:[%s566] sm:$0xff]
      %v568 = vld [vmem:[%s566 + $0x8] sm:$0xff]
      %v569 = vld [vmem:[%s566 + $0x10] sm:$0xff]
      %571 = vset.pattern.permute.xlu0 0
      %572 = vperm.xlu0 %571, %v567
      %v573 = vpop.permute.xlu0 %572
      %576 = vset.pattern.permute.xlu0 0
      %577 = vperm.xlu0 %576, %v568
      %v578 = vpop.permute.xlu0 %577
      %581 = vset.pattern.permute.xlu0 0
      %582 = vperm.xlu0 %581, %v569
      %v583 = vpop.permute.xlu0 %582
      %v585 = vmul.f32 %v560, %v573
      %v586 = vmul.f32 %v561, %v573
      %v587 = vmul.f32 %v562, %v578
      %v588 = vmul.f32 %v563, %v578
      %v589 = vmul.f32 %v564, %v583
      %v590 = vmul.f32 %v565, %v583
      %v591 = vadd.f32 %v522, %v585
      %v592 = vadd.f32 %v523, %v586
      %v593 = vadd.f32 %v524, %v587
      %v594 = vadd.f32 %v525, %v588
      %v595 = vadd.f32 %v526, %v589
      %v596 = vadd.f32 %v527, %v590
      %597 = vrot.lane.b32.xlu0 %v428, 15
      %v598 = vpop.permute.xlu0 %597
      %599 = vrot.lane.b32.xlu0 %v430, 15
      %v600 = vpop.permute.xlu0 %599
      %601 = vrot.lane.b32.xlu0 %v432, 15
      %v602 = vpop.permute.xlu0 %601
      %603 = vrot.lane.b32.xlu0 %v429, 15
      %v604 = vpop.permute.xlu0 %603
      %605 = vrot.lane.b32.xlu0 %v431, 15
      %v606 = vpop.permute.xlu0 %605
      %607 = vrot.lane.b32.xlu0 %v433, 15
      %v608 = vpop.permute.xlu0 %607
      %vm609 = vcmp.lt.s32.totalorder %v472, 15
      %v610 = vsel %vm609, %v598, %v604
      %v611 = vsel %vm609, %v600, %v606
      %v612 = vsel %vm609, %v602, %v608
      %v613 = vsel %vm609, %v604, %v598
      %v614 = vsel %vm609, %v606, %v600
      %v615 = vsel %vm609, %v608, %v602
      %s616 = scalar_lea.vmem %s5, 2
      %v617 = vld [vmem:[%s616] ss:$8 sm:$0x3]
      %v619 = vlaneseq
      %v620 = vshrl.u32 %v619, 7
      %v621 = vsub.s32 0, %v620
      %v622 = vrot.slane %v617, %v621
      %v623 = vlaneseq
      %v624 = vshrl.u32 %v623, 7
      %v625 = vsub.s32 1, %v624
      %v626 = vrot.slane %v617, %v625
      %v629 = vmul.f32 %v613, %v622
      %v630 = vmul.f32 %v610, %v626
      %v631 = vmul.f32 %v614, %v622
      %v632 = vmul.f32 %v611, %v626
      %v633 = vmul.f32 %v615, %v622
      %v634 = vmul.f32 %v612, %v626
      %s635 = scalar_lea.vmem %s3, 48
      %v636 = vld [vmem:[%s635] sm:$0xff]
      %v637 = vld [vmem:[%s635 + $0x8] sm:$0xff]
      %v638 = vld [vmem:[%s635 + $0x10] sm:$0xff]
      %640 = vset.pattern.permute.xlu0 0
      %641 = vperm.xlu0 %640, %v636
      %v642 = vpop.permute.xlu0 %641
      %645 = vset.pattern.permute.xlu0 0
      %646 = vperm.xlu0 %645, %v637
      %v647 = vpop.permute.xlu0 %646
      %650 = vset.pattern.permute.xlu0 0
      %651 = vperm.xlu0 %650, %v638
      %v652 = vpop.permute.xlu0 %651
      %v654 = vmul.f32 %v629, %v642
      %v655 = vmul.f32 %v630, %v642
      %v656 = vmul.f32 %v631, %v647
      %v657 = vmul.f32 %v632, %v647
      %v658 = vmul.f32 %v633, %v652
      %v659 = vmul.f32 %v634, %v652
      %v660 = vadd.f32 %v591, %v654
      %v661 = vadd.f32 %v592, %v655
      %v662 = vadd.f32 %v593, %v656
      %v663 = vadd.f32 %v594, %v657
      %v664 = vadd.f32 %v595, %v658
      %v665 = vadd.f32 %v596, %v659
      %666 = vrot.lane.b32.xlu0 %v428, 1
      %v667 = vpop.permute.xlu0 %666
      %668 = vrot.lane.b32.xlu0 %v430, 1
      %v669 = vpop.permute.xlu0 %668
      %670 = vrot.lane.b32.xlu0 %v432, 1
      %v671 = vpop.permute.xlu0 %670
      %672 = vrot.lane.b32.xlu0 %v429, 1
      %v673 = vpop.permute.xlu0 %672
      %674 = vrot.lane.b32.xlu0 %v431, 1
      %v675 = vpop.permute.xlu0 %674
      %676 = vrot.lane.b32.xlu0 %v433, 1
      %v677 = vpop.permute.xlu0 %676
      %vm678 = vcmp.lt.s32.totalorder %v472, 1
      %v679 = vsel %vm678, %v667, %v673
      %v680 = vsel %vm678, %v669, %v675
      %v681 = vsel %vm678, %v671, %v677
      %v682 = vsel %vm678, %v673, %v667
      %v683 = vsel %vm678, %v675, %v669
      %v684 = vsel %vm678, %v677, %v671
      %s685 = scalar_lea.vmem %s5, 3
      %v686 = vld [vmem:[%s685] ss:$8 sm:$0x3]
      %v688 = vlaneseq
      %v689 = vshrl.u32 %v688, 7
      %v690 = vsub.s32 0, %v689
      %v691 = vrot.slane %v686, %v690
      %v692 = vlaneseq
      %v693 = vshrl.u32 %v692, 7
      %v694 = vsub.s32 1, %v693
      %v695 = vrot.slane %v686, %v694
      %v698 = vmul.f32 %v682, %v691
      %v699 = vmul.f32 %v679, %v695
      %v700 = vmul.f32 %v683, %v691
      %v701 = vmul.f32 %v680, %v695
      %v702 = vmul.f32 %v684, %v691
      %v703 = vmul.f32 %v681, %v695
      %s704 = scalar_lea.vmem %s3, 72
      %v705 = vld [vmem:[%s704] sm:$0xff]
      %v706 = vld [vmem:[%s704 + $0x8] sm:$0xff]
      %v707 = vld [vmem:[%s704 + $0x10] sm:$0xff]
      %709 = vset.pattern.permute.xlu0 0
      %710 = vperm.xlu0 %709, %v705
      %v711 = vpop.permute.xlu0 %710
      %714 = vset.pattern.permute.xlu0 0
      %715 = vperm.xlu0 %714, %v706
      %v716 = vpop.permute.xlu0 %715
      %719 = vset.pattern.permute.xlu0 0
      %720 = vperm.xlu0 %719, %v707
      %v721 = vpop.permute.xlu0 %720
      %v723 = vmul.f32 %v698, %v711
      %v724 = vmul.f32 %v699, %v711
      %v725 = vmul.f32 %v700, %v716
      %v726 = vmul.f32 %v701, %v716
      %v727 = vmul.f32 %v702, %v721
      %v728 = vmul.f32 %v703, %v721
      %v729 = vadd.f32 %v660, %v723
      %v730 = vadd.f32 %v661, %v724
      %v731 = vadd.f32 %v662, %v725
      %v732 = vadd.f32 %v663, %v726
      %v733 = vadd.f32 %v664, %v727
      %v734 = vadd.f32 %v665, %v728
      %735 = vrot.lane.b32.xlu0 %v428, 127
      %v736 = vpop.permute.xlu0 %735
      %737 = vrot.lane.b32.xlu0 %v430, 127
      %v738 = vpop.permute.xlu0 %737
      %739 = vrot.lane.b32.xlu0 %v432, 127
      %v740 = vpop.permute.xlu0 %739
      %741 = vrot.lane.b32.xlu0 %v429, 127
      %v742 = vpop.permute.xlu0 %741
      %743 = vrot.lane.b32.xlu0 %v431, 127
      %v744 = vpop.permute.xlu0 %743
      %745 = vrot.lane.b32.xlu0 %v433, 127
      %v746 = vpop.permute.xlu0 %745
      %vm747 = vcmp.lt.s32.totalorder %v472, 127
      %v748 = vsel %vm747, %v736, %v742
      %v749 = vsel %vm747, %v738, %v744
      %v750 = vsel %vm747, %v740, %v746
      %v751 = vsel %vm747, %v742, %v736
      %v752 = vsel %vm747, %v744, %v738
      %v753 = vsel %vm747, %v746, %v740
      %s754 = scalar_lea.vmem %s5, 4
      %v755 = vld [vmem:[%s754] ss:$8 sm:$0x3]
      %v757 = vlaneseq
      %v758 = vshrl.u32 %v757, 7
      %v759 = vsub.s32 0, %v758
      %v760 = vrot.slane %v755, %v759
      %v761 = vlaneseq
      %v762 = vshrl.u32 %v761, 7
      %v763 = vsub.s32 1, %v762
      %v764 = vrot.slane %v755, %v763
      %v767 = vmul.f32 %v748, %v760
      %v768 = vmul.f32 %v751, %v764
      %v769 = vmul.f32 %v749, %v760
      %v770 = vmul.f32 %v752, %v764
      %v771 = vmul.f32 %v750, %v760
      %v772 = vmul.f32 %v753, %v764
      %s773 = scalar_lea.vmem %s3, 120
      %v774 = vld [vmem:[%s773] sm:$0xff]
      %v775 = vld [vmem:[%s773 + $0x8] sm:$0xff]
      %v776 = vld [vmem:[%s773 + $0x10] sm:$0xff]
      %778 = vset.pattern.permute.xlu0 0
      %779 = vperm.xlu0 %778, %v774
      %v780 = vpop.permute.xlu0 %779
      %783 = vset.pattern.permute.xlu0 0
      %784 = vperm.xlu0 %783, %v775
      %v785 = vpop.permute.xlu0 %784
      %788 = vset.pattern.permute.xlu0 0
      %789 = vperm.xlu0 %788, %v776
      %v790 = vpop.permute.xlu0 %789
      %v792 = vmul.f32 %v767, %v780
      %v793 = vmul.f32 %v768, %v780
      %v794 = vmul.f32 %v769, %v785
      %v795 = vmul.f32 %v770, %v785
      %v796 = vmul.f32 %v771, %v790
      %v797 = vmul.f32 %v772, %v790
      %v798 = vadd.f32 %v729, %v792
      %v799 = vadd.f32 %v730, %v793
      %v800 = vadd.f32 %v731, %v794
      %v801 = vadd.f32 %v732, %v795
      %v802 = vadd.f32 %v733, %v796
      %v803 = vadd.f32 %v734, %v797
      %804 = vrot.lane.b32.xlu0 %v428, 113
      %v805 = vpop.permute.xlu0 %804
      %806 = vrot.lane.b32.xlu0 %v430, 113
      %v807 = vpop.permute.xlu0 %806
      %808 = vrot.lane.b32.xlu0 %v432, 113
      %v809 = vpop.permute.xlu0 %808
      %810 = vrot.lane.b32.xlu0 %v429, 113
      %v811 = vpop.permute.xlu0 %810
      %812 = vrot.lane.b32.xlu0 %v431, 113
      %v813 = vpop.permute.xlu0 %812
      %814 = vrot.lane.b32.xlu0 %v433, 113
      %v815 = vpop.permute.xlu0 %814
      %vm816 = vcmp.lt.s32.totalorder %v472, 113
      %v817 = vsel %vm816, %v805, %v811
      %v818 = vsel %vm816, %v807, %v813
      %v819 = vsel %vm816, %v809, %v815
      %v820 = vsel %vm816, %v811, %v805
      %v821 = vsel %vm816, %v813, %v807
      %v822 = vsel %vm816, %v815, %v809
      %s823 = scalar_lea.vmem %s5, 5
      %v824 = vld [vmem:[%s823] ss:$8 sm:$0x3]
      %v826 = vlaneseq
      %v827 = vshrl.u32 %v826, 7
      %v828 = vsub.s32 0, %v827
      %v829 = vrot.slane %v824, %v828
      %v830 = vlaneseq
      %v831 = vshrl.u32 %v830, 7
      %v832 = vsub.s32 1, %v831
      %v833 = vrot.slane %v824, %v832
      %v836 = vmul.f32 %v817, %v829
      %v837 = vmul.f32 %v820, %v833
      %v838 = vmul.f32 %v818, %v829
      %v839 = vmul.f32 %v821, %v833
      %v840 = vmul.f32 %v819, %v829
      %v841 = vmul.f32 %v822, %v833
      %s842 = scalar_lea.vmem %s3, 144
      %v843 = vld [vmem:[%s842] sm:$0xff]
      %v844 = vld [vmem:[%s842 + $0x8] sm:$0xff]
      %v845 = vld [vmem:[%s842 + $0x10] sm:$0xff]
      %847 = vset.pattern.permute.xlu0 0
      %848 = vperm.xlu0 %847, %v843
      %v849 = vpop.permute.xlu0 %848
      %852 = vset.pattern.permute.xlu0 0
      %853 = vperm.xlu0 %852, %v844
      %v854 = vpop.permute.xlu0 %853
      %857 = vset.pattern.permute.xlu0 0
      %858 = vperm.xlu0 %857, %v845
      %v859 = vpop.permute.xlu0 %858
      %v861 = vmul.f32 %v836, %v849
      %v862 = vmul.f32 %v837, %v849
      %v863 = vmul.f32 %v838, %v854
      %v864 = vmul.f32 %v839, %v854
      %v865 = vmul.f32 %v840, %v859
      %v866 = vmul.f32 %v841, %v859
      %v867 = vadd.f32 %v798, %v861
      %v868 = vadd.f32 %v799, %v862
      %v869 = vadd.f32 %v800, %v863
      %v870 = vadd.f32 %v801, %v864
      %v871 = vadd.f32 %v802, %v865
      %v872 = vadd.f32 %v803, %v866
      %873 = vrot.lane.b32.xlu0 %v428, 112
      %v874 = vpop.permute.xlu0 %873
      %875 = vrot.lane.b32.xlu0 %v430, 112
      %v876 = vpop.permute.xlu0 %875
      %877 = vrot.lane.b32.xlu0 %v432, 112
      %v878 = vpop.permute.xlu0 %877
      %879 = vrot.lane.b32.xlu0 %v429, 112
      %v880 = vpop.permute.xlu0 %879
      %881 = vrot.lane.b32.xlu0 %v431, 112
      %v882 = vpop.permute.xlu0 %881
      %883 = vrot.lane.b32.xlu0 %v433, 112
      %v884 = vpop.permute.xlu0 %883
      %vm885 = vcmp.lt.s32.totalorder %v472, 112
      %v886 = vsel %vm885, %v874, %v880
      %v887 = vsel %vm885, %v876, %v882
      %v888 = vsel %vm885, %v878, %v884
      %v889 = vsel %vm885, %v880, %v874
      %v890 = vsel %vm885, %v882, %v876
      %v891 = vsel %vm885, %v884, %v878
      %s892 = scalar_lea.vmem %s5, 6
      %v893 = vld [vmem:[%s892] ss:$8 sm:$0x3]
      %v895 = vlaneseq
      %v896 = vshrl.u32 %v895, 7
      %v897 = vsub.s32 0, %v896
      %v898 = vrot.slane %v893, %v897
      %v899 = vlaneseq
      %v900 = vshrl.u32 %v899, 7
      %v901 = vsub.s32 1, %v900
      %v902 = vrot.slane %v893, %v901
      %v905 = vmul.f32 %v886, %v898
      %v906 = vmul.f32 %v889, %v902
      %v907 = vmul.f32 %v887, %v898
      %v908 = vmul.f32 %v890, %v902
      %v909 = vmul.f32 %v888, %v898
      %v910 = vmul.f32 %v891, %v902
      %s911 = scalar_lea.vmem %s3, 168
      %v912 = vld [vmem:[%s911] sm:$0xff]
      %v913 = vld [vmem:[%s911 + $0x8] sm:$0xff]
      %v914 = vld [vmem:[%s911 + $0x10] sm:$0xff]
      %916 = vset.pattern.permute.xlu0 0
      %917 = vperm.xlu0 %916, %v912
      %v918 = vpop.permute.xlu0 %917
      %921 = vset.pattern.permute.xlu0 0
      %922 = vperm.xlu0 %921, %v913
      %v923 = vpop.permute.xlu0 %922
      %926 = vset.pattern.permute.xlu0 0
      %927 = vperm.xlu0 %926, %v914
      %v928 = vpop.permute.xlu0 %927
      %v930 = vmul.f32 %v905, %v918
      %v931 = vmul.f32 %v906, %v918
      %v932 = vmul.f32 %v907, %v923
      %v933 = vmul.f32 %v908, %v923
      %v934 = vmul.f32 %v909, %v928
      %v935 = vmul.f32 %v910, %v928
      %v936 = vadd.f32 %v867, %v930
      %v937 = vadd.f32 %v868, %v931
      %v938 = vadd.f32 %v869, %v932
      %v939 = vadd.f32 %v870, %v933
      %v940 = vadd.f32 %v871, %v934
      %v941 = vadd.f32 %v872, %v935
      %942 = vrot.lane.b32.xlu0 %v428, 111
      %v943 = vpop.permute.xlu0 %942
      %944 = vrot.lane.b32.xlu0 %v430, 111
      %v945 = vpop.permute.xlu0 %944
      %946 = vrot.lane.b32.xlu0 %v432, 111
      %v947 = vpop.permute.xlu0 %946
      %948 = vrot.lane.b32.xlu0 %v429, 111
      %v949 = vpop.permute.xlu0 %948
      %950 = vrot.lane.b32.xlu0 %v431, 111
      %v951 = vpop.permute.xlu0 %950
      %952 = vrot.lane.b32.xlu0 %v433, 111
      %v953 = vpop.permute.xlu0 %952
      %vm954 = vcmp.lt.s32.totalorder %v472, 111
      %v955 = vsel %vm954, %v943, %v949
      %v956 = vsel %vm954, %v945, %v951
      %v957 = vsel %vm954, %v947, %v953
      %v958 = vsel %vm954, %v949, %v943
      %v959 = vsel %vm954, %v951, %v945
      %v960 = vsel %vm954, %v953, %v947
      %s961 = scalar_lea.vmem %s5, 7
      %v962 = vld [vmem:[%s961] ss:$8 sm:$0x3]
      %v964 = vlaneseq
      %v965 = vshrl.u32 %v964, 7
      %v966 = vsub.s32 0, %v965
      %v967 = vrot.slane %v962, %v966
      %v968 = vlaneseq
      %v969 = vshrl.u32 %v968, 7
      %v970 = vsub.s32 1, %v969
      %v971 = vrot.slane %v962, %v970
      %v974 = vmul.f32 %v955, %v967
      %v975 = vmul.f32 %v958, %v971
      %v976 = vmul.f32 %v956, %v967
      %v977 = vmul.f32 %v959, %v971
      %v978 = vmul.f32 %v957, %v967
      %v979 = vmul.f32 %v960, %v971
      %s980 = scalar_lea.vmem %s3, 192
      %v981 = vld [vmem:[%s980] sm:$0xff]
      %v982 = vld [vmem:[%s980 + $0x8] sm:$0xff]
      %v983 = vld [vmem:[%s980 + $0x10] sm:$0xff]
      %985 = vset.pattern.permute.xlu0 0
      %986 = vperm.xlu0 %985, %v981
      %v987 = vpop.permute.xlu0 %986
      %990 = vset.pattern.permute.xlu0 0
      %991 = vperm.xlu0 %990, %v982
      %v992 = vpop.permute.xlu0 %991
      %995 = vset.pattern.permute.xlu0 0
      %996 = vperm.xlu0 %995, %v983
      %v997 = vpop.permute.xlu0 %996
      %v999 = vmul.f32 %v974, %v987
      %v1000 = vmul.f32 %v975, %v987
      %v1001 = vmul.f32 %v976, %v992
      %v1002 = vmul.f32 %v977, %v992
      %v1003 = vmul.f32 %v978, %v997
      %v1004 = vmul.f32 %v979, %v997
      %v1005 = vadd.f32 %v936, %v999
      %v1006 = vadd.f32 %v937, %v1000
      %v1007 = vadd.f32 %v938, %v1001
      %v1008 = vadd.f32 %v939, %v1002
      %v1009 = vadd.f32 %v940, %v1003
      %v1010 = vadd.f32 %v941, %v1004
      %v1011 = vld [vmem:[%s4] sm:$0xff]
      %v1012 = vld [vmem:[%s4 + $0x8] sm:$0xff]
      %v1013 = vld [vmem:[%s4 + $0x10] sm:$0xff]
      %1015 = vset.pattern.permute.xlu0 0
      %1016 = vperm.xlu0 %1015, %v1011
      %v1017 = vpop.permute.xlu0 %1016
      %1020 = vset.pattern.permute.xlu0 0
      %1021 = vperm.xlu0 %1020, %v1012
      %v1022 = vpop.permute.xlu0 %1021
      %1025 = vset.pattern.permute.xlu0 0
      %1026 = vperm.xlu0 %1025, %v1013
      %v1027 = vpop.permute.xlu0 %1026
      %v1029 = vadd.f32 %v1005, %v1017
      %v1030 = vadd.f32 %v1006, %v1017
      %v1031 = vadd.f32 %v1007, %v1022
      %v1032 = vadd.f32 %v1008, %v1022
      %v1033 = vadd.f32 %v1009, %v1027
      %v1034 = vadd.f32 %v1010, %v1027
      %v1035 = vmax.f32 %v1029, 0.0
      %v1036 = vmax.f32 %v1030, 0.0
      %v1037 = vmax.f32 %v1031, 0.0
      %v1038 = vmax.f32 %v1032, 0.0
      %v1039 = vmax.f32 %v1033, 0.0
      %v1040 = vmax.f32 %v1034, 0.0
      %v1041 = vld [vmem:[%s6] sm:$0xf]
      %v1042 = vld [vmem:[%s7] sm:$0xf]
      %1044 = vset.pattern.permute.xlu0 0
      %1045 = vperm.xlu0 %1044, %v1042
      %v1046 = vpop.permute.xlu0 %1045
      %vm1048 = vcmask 195584
      %v1050 = vsel %vm1048, %v1041, 0
      %1052 = vmatprep.subr.mxu0 0.0
      %1053 = vmatpush1.msra.mxu0 0.0
      %1054 = vmatprep.subr.mxu0 0.0
      %1055 = vmatpush1.msra.mxu0 0.0
      %1056 = vmatprep.subr.mxu0 0.0
      %1057 = vmatpush1.msra.mxu0 0.0
      %1058 = vmatprep.subr.mxu0 0.0
      %1059 = vmatpush1.msra.mxu0 0.0
      %1060 = vmatprep.subr.mxu0 0.0
      %1061 = vmatpush1.msra.mxu0 0.0
      %1062 = vmatprep.subr.mxu0 0.0
      %1063 = vmatpush1.msra.mxu0 0.0
      %1064 = vmatprep.subr.mxu0 0.0
      %1065 = vmatpush1.msra.mxu0 0.0
      %1066 = vmatprep.subr.mxu0 0.0
      %1067 = vmatpush1.msra.mxu0 0.0
      %1068 = vmatprep.subr.mxu0 0.0
      %1069 = vmatpush1.msra.mxu0 0.0
      %1070 = vmatprep.subr.mxu0 0.0
      %1071 = vmatpush1.msra.mxu0 0.0
      %1072 = vmatprep.subr.mxu0 0.0
      %1073 = vmatpush1.msra.mxu0 0.0
      %1074 = vmatprep.subr.mxu0 0.0
      %1075 = vmatpush1.msra.mxu0 0.0
      %1076 = vmatprep.subr.mxu0 0.0
      %1077 = vmatpush1.msra.mxu0 0.0
      %1078 = vmatprep.subr.mxu0 %v1040
      %1079 = vmatpush1.msra.mxu0 %v1039
      %1080 = vmatprep.subr.mxu0 %v1038
      %1081 = vmatpush1.msra.mxu0 %v1037
      %1082 = vmatprep.subr.mxu0 %v1036
      %1083 = vmatpush1.msra.mxu0 %v1035
      %1084 = vmatprep.subr.mxu0 0.0
      %1085 = vmatpush2.msra.mxu0 0.0
      %1086 = vmatprep.subr.mxu0 0.0
      %1087 = vmatpush2.msra.mxu0 0.0
      %1088 = vmatprep.subr.mxu0 0.0
      %1089 = vmatpush2.msra.mxu0 0.0
      %1090 = vmatprep.subr.mxu0 0.0
      %1091 = vmatpush2.msra.mxu0 0.0
      %1092 = vmatprep.subr.mxu0 0.0
      %1093 = vmatpush2.msra.mxu0 0.0
      %1094 = vmatprep.subr.mxu0 0.0
      %1095 = vmatpush2.msra.mxu0 0.0
      %1096 = vmatprep.subr.mxu0 0.0
      %1097 = vmatpush2.msra.mxu0 0.0
      %1098 = vmatprep.subr.mxu0 0.0
      %1099 = vmatpush2.msra.mxu0 0.0
      %1100 = vmatprep.subr.mxu0 0.0
      %1101 = vmatpush2.msra.mxu0 0.0
      %1102 = vmatprep.subr.mxu0 0.0
      %1103 = vmatpush2.msra.mxu0 0.0
      %1104 = vmatprep.subr.mxu0 0.0
      %1105 = vmatpush2.msra.mxu0 0.0
      %1106 = vmatprep.subr.mxu0 0.0
      %1107 = vmatpush2.msra.mxu0 0.0
      %1108 = vmatprep.subr.mxu0 0.0
      %1109 = vmatpush2.msra.mxu0 0.0
      %1110 = vmatprep.subr.mxu0 0.0
      %1111 = vmatpush2.msra.mxu0 0.0
      %1112 = vmatprep.subr.mxu0 0.0
      %1113 = vmatpush2.msra.mxu0 0.0
      %1114 = vmatprep.subr.mxu0 0.0
      %1115 = vmatpush2.msra.mxu0 0.0
      %1116 = vmatprep.mubr.f32.mxu0 0.0
      %1117 = vmatmul.mubr.f32.gmra.mxu0 %v1050
      %v1118 = vpop.f32.mrf.mxu0
      %v1119 = vadd.f32 %v1046, %v1118
      %v1120 = vpop.f32.mrf.mxu0
      %v1121 = vadd.f32 %v1046, %v1120
      %1122 = vdwg.mxu0
      %v1124 = vadd.f32 %v1119, %v306
      %v1125 = vadd.f32 %v1121, %v329
      %v1128 = vcombine.low %v1124, %v1125
      %1130 = vst [vmem:[%s305] sm:$0xff] %v1128
      %p1131 = scmp.lt.s32.totalorder %s19, 1
      %s1132 = scalar_select %p1131, %s19, 1
      %s1133 = smul.addr %s1132, 2
      %s1134 = smul.addr %s1133, 4
      %s1135 = scalar_lea.vmem %s8, %s1134
      // Predicated region
      $region53: #{_forward.1} parent=51 // pred_check
        %p1136 = pneg %p210
      $region54: #{_forward.1} parent=51 // pred_check_branch
        %1138 = sbr.rel (%p1136) target = $region56
      $region55: #{_forward.1} parent=51 // pred_region
        _
      $region56: #{_forward.1} parent=51 // pred_fallthru
        _
    $region52: #{_forward.1} parent=5 // pred_fallthru
      _
    %p1139 = scmp.le.s32.totalorder 2, %s14
    // Predicated region
    $region57: #{_forward.1} parent=5 // pred_check
      %p1140 = pneg %p1139
    $region58: #{_forward.1} parent=5 // pred_check_branch
      %1142 = sbr.rel (%p1140) target = $region60
    $region59: #{_forward.1} parent=5 // pred_region
      %s1143 = ssub.s32 %s14, 2
      // Predicated region
      $region61: #{_forward.1} parent=59 // pred_check
        %p1144 = pneg %p216
      $region62: #{_forward.1} parent=59 // pred_check_branch
        %1146 = sbr.rel (%p1144) target = $region64
      $region63: #{_forward.1} parent=59 // pred_region
        %p1147 = scmp.lt.s32.totalorder %s20, 1
        %s1148 = scalar_select %p1147, %s20, 1
        %s1149 = smul.addr %s1148, 2
        %s1150 = smul.addr %s1149, 4
        %s1151 = scalar_lea.vmem %s8, %s1150
      $region64: #{_forward.1} parent=59 // pred_fallthru
        _
    $region60: #{_forward.1} parent=5 // pred_fallthru
      _
  $region6: #{_forward.1} parent=0 // loop_footer
    %s18 = sadd.s32 1, %s14
  $region7: #{_forward.1} parent=0 // loop_footer_branch
    %13 = sbr.rel target = $region3
  $region8: #{_forward.1} parent=0 // loop_exit
    _

</llo_original>
